<compile_context>
chip_gen: v5e
topology: v5e:2x2
jax: 0.10.0
libtpu: 0.0.40
codegen_flags: <defaults>
</compile_context>

<pallas_src>
import functools

import jax
import jax.numpy as jnp
from jax.experimental import pallas as pl
from jax.experimental.pallas import tpu as pltpu


LEAKY_SLOPE = 0.25  # 2.5e-1, as in the PyTorch module
MAX_TILE_B = 2048
LANE = 128


def _leaky_relu(x):
    return jnp.where(x > 0, x, LEAKY_SLOPE * x)


def _cdiv(a, b):
    return -(-a // b)


def _round_up(n, m):
    return _cdiv(n, m) * m


# --------------------------------- kernel ---------------------------------- #

def fused_rnp_kernel(x_ref, w1_ref, w2_ref, w3_ref, b_ref, out_ref, *,
                     h1x2, h2x2, out_dim, lane_reps):
    """One (head, batch-tile) grid step.  Batch lives on the LANE axis.

    x_ref  : [in, TB]                 bf16  (batch on lanes)
    w1_ref : [2*H1, in]               bf16  (random | pred stacked on rows)
    w2_ref : [2*H2, 2*H1]             bf16  (block-diagonal random / pred, transposed)
    w3_ref : [2*out, 2*H2]            bf16  (block-diagonal random / pred, transposed)
    b_ref  : [2*H1 + 2*H2 + 2*out, 128] f32 (lane-replicated b1|b2|b3 columns)
    out_ref: [3*out, TB]              f32   (= unc | random_out | pred_out rows)
    """

    def bias(lo, hi):
        b = b_ref[lo:hi, :]                       # [rows, 128], already lane-dense
        if lane_reps > 1:
            b = jnp.tile(b, (1, lane_reps))       # pure vreg copies, no x-lane moves
        return b

    x = x_ref[...]                                # [in, TB] bf16

    # Layer 1 on the MXU (K = in_dim pads to 8); batch stays on lanes.
    h1 = jnp.dot(w1_ref[...], x, preferred_element_type=jnp.float32)
    h1 = _leaky_relu(h1 + bias(0, h1x2))          # [2*H1, TB] f32

    # Layers 2 / 3: random & pred evaluated together via block-diag weights.
    h2 = jnp.dot(w2_ref[...], h1.astype(jnp.bfloat16),
                 preferred_element_type=jnp.float32)
    h2 = _leaky_relu(h2 + bias(h1x2, h1x2 + h2x2))                    # [2*H2, TB]

    o = jnp.dot(w3_ref[...], h2.astype(jnp.bfloat16),
                preferred_element_type=jnp.float32)
    o = o + bias(h1x2 + h2x2, h1x2 + h2x2 + 2 * out_dim)              # [2*out, TB]

    rand_out = o[0:out_dim, :]
    pred_out = o[out_dim:2 * out_dim, :]
    diff = pred_out - rand_out
    unc = diff * diff * 0.5
    # Row-packed (sublane) combined output: unc | rand | pred.  Lane axis is
    # the full, dense batch tile -> unmasked stores, contiguous writeback.
    out_ref[...] = jnp.concatenate([unc, o], axis=0)


# ------------------------------- entry point ------------------------------- #

@jax.jit
def multimodal_rnp_forward(x_1, x_2, x_3, packed):
    """Three RNP heads in one fused pallas_call.

    packed = (w1[3,2*H1,in] bf16, w2[3,2*H2,2*H1] bf16, w3[3,2*out,2*H2] bf16,
              bias[3,Lb,128] f32)
    returns (u1, r1, p1, u2, r2, p2, u3, r3, p3), each [B, out] f32.
    """
    w1, w2, w3, bias = packed
    n_heads, h1x2, in_dim = w1.shape
    h2x2 = w2.shape[1]
    out2 = w3.shape[1]
    out_dim = out2 // 2
    bias_len = bias.shape[1]

    B = x_1.shape[0]
    # Batch on the LANE axis: [3, in, B], bf16 operands for the MXU.
    x_all = jnp.stack([x_1, x_2, x_3], axis=0).astype(jnp.bfloat16)
    x_all = jnp.transpose(x_all, (0, 2, 1))                 # [3, in, B]

    # Batch tiling: as few, large tiles as possible (<= 2048), multiple of 128
    # so every tile is lane-dense, sized to avoid near-2x padding.
    nb = _cdiv(B, MAX_TILE_B)
    tile_b = _round_up(_cdiv(B, nb), LANE)
    bp = tile_b * nb
    if bp != B:
        x_all = jnp.pad(x_all, ((0, 0), (0, 0), (0, bp - B)))
    lane_reps = tile_b // LANE

    kernel = functools.partial(
        fused_rnp_kernel, h1x2=h1x2, h2x2=h2x2, out_dim=out_dim,
        lane_reps=lane_reps)

    out = pl.pallas_call(
        kernel,
        out_shape=jax.ShapeDtypeStruct((n_heads, 3 * out_dim, bp), jnp.float32),
        grid_spec=pltpu.PrefetchScalarGridSpec(
            num_scalar_prefetch=0,
            grid=(n_heads, bp // tile_b),
            in_specs=[
                pl.BlockSpec((pl.Squeezed(), in_dim, tile_b),
                             lambda h, b: (h, 0, b)),
                pl.BlockSpec((pl.Squeezed(), h1x2, in_dim),
                             lambda h, b: (h, 0, 0)),
                pl.BlockSpec((pl.Squeezed(), h2x2, h1x2),
                             lambda h, b: (h, 0, 0)),
                pl.BlockSpec((pl.Squeezed(), out2, h2x2),
                             lambda h, b: (h, 0, 0)),
                pl.BlockSpec((pl.Squeezed(), bias_len, LANE),
                             lambda h, b: (h, 0, 0)),
            ],
            out_specs=pl.BlockSpec((pl.Squeezed(), 3 * out_dim, tile_b),
                                   lambda h, b: (h, 0, b)),
        ),
        compiler_params=pltpu.CompilerParams(
            dimension_semantics=("parallel", "parallel")),
    )(x_all, w1, w2, w3, bias)

    out = out[:, :, :B]                                      # [3, 3*out, B]
    results = []
    for h in range(n_heads):
        unc = out[h, 0:out_dim, :].T
        rnd = out[h, out_dim:2 * out_dim, :].T
        prd = out[h, 2 * out_dim:3 * out_dim, :].T
        results.extend([unc, rnd, prd])
    return tuple(results)


# ---------------- deterministic parameter init (synthetic) ----------------- #

def _orthogonal(key, shape, gain):
    # mimic torch.nn.init.orthogonal_ with calculate_gain('leaky_relu', 0.25)
    return jax.nn.initializers.orthogonal(scale=gain)(key, shape, jnp.float32)


def make_rnp_params(key, input_length=2, output_dim=2):
    gain = (2.0 / (1.0 + LEAKY_SLOPE ** 2)) ** 0.5
    dims = [(input_length, 64), (64, 128), (128, output_dim)]

    def make_net(k):
        ks = jax.random.split(k, 3)
        params = []
        for kk, (din, dout) in zip(ks, dims):
            w = _orthogonal(kk, (din, dout), gain)   # stored [in, out]
            b = jnp.zeros((1, dout), jnp.float32)    # biases zeroed, as in init
            params.extend([w, b])
        return tuple(params)

    k_rand, k_pred = jax.random.split(key)
    return {"random": make_net(k_rand), "pred": make_net(k_pred)}


def make_all_params(key, input_length=2, output_dim=2):
    k1, k2, k3 = jax.random.split(key, 3)
    return {
        "rnp_1": make_rnp_params(k1, input_length, output_dim),
        "rnp_2": make_rnp_params(k2, input_length, output_dim),
        "rnp_3": make_rnp_params(k3, input_length, output_dim),
    }


# ------------- host-side repacking into the fused kernel layout ------------ #

def pack_rnp_params(params):
    rw1, rb1, rw2, rb2, rw3, rb3 = params["random"]
    pw1, pb1, pw2, pb2, pw3, pb3 = params["pred"]
    h1 = rw1.shape[1]
    h2 = rw2.shape[1]
    out_dim = rw3.shape[1]

    # Transposed for the batch-on-lanes dataflow (kernel computes W^T @ x^T).
    w1 = jnp.concatenate([rw1, pw1], axis=1).T                     # [2*H1, in]
    w2 = jnp.zeros((2 * h1, 2 * h2), jnp.float32)
    w2 = w2.at[:h1, :h2].set(rw2).at[h1:, h2:].set(pw2).T          # [2*H2, 2*H1]
    w3 = jnp.zeros((2 * h2, 2 * out_dim), jnp.float32)
    w3 = w3.at[:h2, :out_dim].set(rw3).at[h2:, out_dim:].set(pw3).T  # [2*out, 2*H2]

    bias_col = jnp.concatenate([rb1, pb1, rb2, pb2, rb3, pb3], axis=1).T  # [Lb, 1]
    bias = jnp.broadcast_to(bias_col, (bias_col.shape[0], LANE))          # [Lb, 128]

    return (w1.astype(jnp.bfloat16), w2.astype(jnp.bfloat16),
            w3.astype(jnp.bfloat16), jnp.asarray(bias, jnp.float32))


def pack_all_params(all_params):
    heads = [pack_rnp_params(all_params[k]) for k in ("rnp_1", "rnp_2", "rnp_3")]
    return tuple(jnp.stack([h[i] for h in heads], axis=0) for i in range(4))


# --------------------------------- reference -------------------------------- #

def _rnp_ref(x, params):
    # Pure-f32, unfused reference of the original module math.
    def mlp(p):
        w1, b1, w2, b2, w3, b3 = p
        a = _leaky_relu(x @ w1 + b1)
        a = _leaky_relu(a @ w2 + b2)
        return a @ w3 + b3
    r = mlp(params["random"])
    p = mlp(params["pred"])
    return (p - r) ** 2 / 2, r, p


if __name__ == "__main__":
    key = jax.random.PRNGKey(0)
    k_params, kx1, kx2, kx3 = jax.random.split(key, 4)

    input_length = 2
    output_dim = 2
    batch = 8

    all_params = make_all_params(k_params, input_length, output_dim)
    packed = pack_all_params(all_params)     # one-time host-side repack (bf16)

    x_1 = jax.random.normal(kx1, (batch, input_length), jnp.float32)
    x_2 = jax.random.normal(kx2, (batch, input_length), jnp.float32)
    x_3 = jax.random.normal(kx3, (batch, input_length), jnp.float32)

    outs = multimodal_rnp_forward(x_1, x_2, x_3, packed)
    outs = jax.block_until_ready(outs)

    # Sanity-check against a pure-JAX f32 reference.  The kernel runs bf16
    # matmul operands with f32 accumulation, so the tolerance is loosened
    # accordingly (per the performance review).
    refs = []
    for x, name in ((x_1, "rnp_1"), (x_2, "rnp_2"), (x_3, "rnp_3")):
        refs.extend(_rnp_ref(x, all_params[name]))
    for got, want in zip(outs, refs):
        assert got.shape == want.shape and got.dtype == want.dtype
        err = float(jnp.max(jnp.abs(got - want)))
        assert jnp.allclose(got, want, atol=1.5e-2, rtol=1.5e-2), \
            f"max abs err {err}"

    print("KERNEL_OK")
</pallas_src>

<mosaic_0001>
module attributes {stable_mosaic.version = 11 : i64} {
  func.func @fused_rnp_kernel(%arg0: i32, %arg1: i32, %arg2: memref<1x2x128xbf16, #tpu.memory_space<vmem>>, %arg3: memref<1x128x2xbf16, #tpu.memory_space<vmem>>, %arg4: memref<1x256x128xbf16, #tpu.memory_space<vmem>>, %arg5: memref<1x4x256xbf16, #tpu.memory_space<vmem>>, %arg6: memref<1x388x128xf32, #tpu.memory_space<vmem>>, %arg7: memref<1x6x128xf32, #tpu.memory_space<vmem>>) attributes {dimension_semantics = [#tpu.dimension_semantics<parallel>, #tpu.dimension_semantics<parallel>], iteration_bounds = array<i64: 3, 1>, scalar_prefetch = 0 : i64, scratch_operands = 0 : i64, tpu.core_type = #tpu.core_type<tc>, window_params = [{transform_indices = @transform_0, window_bounds = array<i64: 1, 2, 128>}, {transform_indices = @transform_1, window_bounds = array<i64: 1, 128, 2>}, {transform_indices = @transform_2, window_bounds = array<i64: 1, 256, 128>}, {transform_indices = @transform_3, window_bounds = array<i64: 1, 4, 256>}, {transform_indices = @transform_4, window_bounds = array<i64: 1, 388, 128>}, {transform_indices = @transform_5, window_bounds = array<i64: 1, 6, 128>}]} {
    %c0 = arith.constant 0 : index
    %c0_0 = arith.constant 0 : index
    %c0_1 = arith.constant 0 : index
    %0 = vector.load %arg2[%c0, %c0_0, %c0_1] : memref<1x2x128xbf16, #tpu.memory_space<vmem>>, vector<1x2x128xbf16>
    %1 = vector.shape_cast %0 : vector<1x2x128xbf16> to vector<2x128xbf16>
    %c0_2 = arith.constant 0 : index
    %c0_3 = arith.constant 0 : index
    %c0_4 = arith.constant 0 : index
    %2 = vector.load %arg3[%c0_2, %c0_3, %c0_4] : memref<1x128x2xbf16, #tpu.memory_space<vmem>>, vector<1x128x2xbf16>
    %3 = vector.shape_cast %2 : vector<1x128x2xbf16> to vector<128x2xbf16>
    %cst = arith.constant dense<0.000000e+00> : vector<128x128xf32>
    %4 = tpu.matmul %3, %1, %cst {dimension_numbers = #tpu.dot_dimension_numbers<[1], [0], [0], [1], [0, 0, 1, 1], [], []>} : vector<128x2xbf16>, vector<2x128xbf16>, vector<128x128xf32> -> vector<128x128xf32>
    %c0_5 = arith.constant 0 : index
    %c0_6 = arith.constant 0 : index
    %c0_7 = arith.constant 0 : index
    %5 = vector.load %arg6[%c0_5, %c0_6, %c0_7] : memref<1x388x128xf32, #tpu.memory_space<vmem>>, vector<1x128x128xf32>
    %6 = vector.shape_cast %5 : vector<1x128x128xf32> to vector<128x128xf32>
    %7 = arith.addf %4, %6 : vector<128x128xf32>
    %cst_8 = arith.constant 0.000000e+00 : f32
    %8 = vector.broadcast %cst_8 : f32 to vector<128x128xf32>
    %9 = arith.cmpf ogt, %7, %8 : vector<128x128xf32>
    %cst_9 = arith.constant 2.500000e-01 : f32
    %10 = vector.broadcast %cst_9 : f32 to vector<128x128xf32>
    %11 = arith.mulf %10, %7 : vector<128x128xf32>
    %12 = arith.select %9, %7, %11 : vector<128x128xi1>, vector<128x128xf32>
    %c0_10 = arith.constant 0 : index
    %c0_11 = arith.constant 0 : index
    %c0_12 = arith.constant 0 : index
    %13 = vector.load %arg4[%c0_10, %c0_11, %c0_12] : memref<1x256x128xbf16, #tpu.memory_space<vmem>>, vector<1x256x128xbf16>
    %14 = vector.shape_cast %13 : vector<1x256x128xbf16> to vector<256x128xbf16>
    %15 = arith.truncf %12 : vector<128x128xf32> to vector<128x128xbf16>
    %cst_13 = arith.constant dense<0.000000e+00> : vector<256x128xf32>
    %16 = tpu.matmul %14, %15, %cst_13 {dimension_numbers = #tpu.dot_dimension_numbers<[1], [0], [0], [1], [0, 0, 1, 1], [], []>} : vector<256x128xbf16>, vector<128x128xbf16>, vector<256x128xf32> -> vector<256x128xf32>
    %c0_14 = arith.constant 0 : index
    %c128 = arith.constant 128 : index
    %c0_15 = arith.constant 0 : index
    %17 = vector.load %arg6[%c0_14, %c128, %c0_15] : memref<1x388x128xf32, #tpu.memory_space<vmem>>, vector<1x256x128xf32>
    %18 = vector.shape_cast %17 : vector<1x256x128xf32> to vector<256x128xf32>
    %19 = arith.addf %16, %18 : vector<256x128xf32>
    %cst_16 = arith.constant 0.000000e+00 : f32
    %20 = vector.broadcast %cst_16 : f32 to vector<256x128xf32>
    %21 = arith.cmpf ogt, %19, %20 : vector<256x128xf32>
    %cst_17 = arith.constant 2.500000e-01 : f32
    %22 = vector.broadcast %cst_17 : f32 to vector<256x128xf32>
    %23 = arith.mulf %22, %19 : vector<256x128xf32>
    %24 = arith.select %21, %19, %23 : vector<256x128xi1>, vector<256x128xf32>
    %c0_18 = arith.constant 0 : index
    %c0_19 = arith.constant 0 : index
    %c0_20 = arith.constant 0 : index
    %25 = vector.load %arg5[%c0_18, %c0_19, %c0_20] : memref<1x4x256xbf16, #tpu.memory_space<vmem>>, vector<1x4x256xbf16>
    %26 = vector.shape_cast %25 : vector<1x4x256xbf16> to vector<4x256xbf16>
    %27 = arith.truncf %24 : vector<256x128xf32> to vector<256x128xbf16>
    %cst_21 = arith.constant dense<0.000000e+00> : vector<4x128xf32>
    %28 = tpu.matmul %26, %27, %cst_21 {dimension_numbers = #tpu.dot_dimension_numbers<[1], [0], [0], [1], [0, 0, 1, 1], [], []>} : vector<4x256xbf16>, vector<256x128xbf16>, vector<4x128xf32> -> vector<4x128xf32>
    %c0_22 = arith.constant 0 : index
    %c384 = arith.constant 384 : index
    %c0_23 = arith.constant 0 : index
    %29 = vector.load %arg6[%c0_22, %c384, %c0_23] : memref<1x388x128xf32, #tpu.memory_space<vmem>>, vector<1x4x128xf32>
    %30 = vector.shape_cast %29 : vector<1x4x128xf32> to vector<4x128xf32>
    %31 = arith.addf %28, %30 : vector<4x128xf32>
    %32 = vector.extract_strided_slice %31 {offsets = [0, 0], sizes = [2, 128], strides = [1, 1]} : vector<4x128xf32> to vector<2x128xf32>
    %33 = vector.extract_strided_slice %31 {offsets = [2, 0], sizes = [2, 128], strides = [1, 1]} : vector<4x128xf32> to vector<2x128xf32>
    %34 = arith.subf %33, %32 : vector<2x128xf32>
    %35 = arith.mulf %34, %34 : vector<2x128xf32>
    %cst_24 = arith.constant 5.000000e-01 : f32
    %36 = vector.broadcast %cst_24 : f32 to vector<2x128xf32>
    %37 = arith.mulf %35, %36 : vector<2x128xf32>
    %38 = tpu.concatenate %37, %31 in 0 : vector<2x128xf32>, vector<4x128xf32> -> vector<6x128xf32>
    %c0_25 = arith.constant 0 : index
    %c0_26 = arith.constant 0 : index
    %c0_27 = arith.constant 0 : index
    %39 = vector.load %arg7[%c0_25, %c0_26, %c0_27] : memref<1x6x128xf32, #tpu.memory_space<vmem>>, vector<1x6x128xf32>
    %40 = vector.shape_cast %39 : vector<1x6x128xf32> to vector<6x128xf32>
    %41 = vector.shape_cast %38 : vector<6x128xf32> to vector<1x6x128xf32>
    tpu.vector_store %arg7[%c0_25, %c0_26, %c0_27], %41 {strides = array<i32>} : memref<1x6x128xf32, #tpu.memory_space<vmem>>, vector<1x6x128xf32>,
    return
  }
  func.func @transform_0(%arg0: i32, %arg1: i32) -> (i32, i32, i32) {
    %c0_i32 = arith.constant 0 : i32
    %c0_i32_0 = arith.constant 0 : i32
    return %arg0, %c0_i32, %arg1 : i32, i32, i32
  }
  func.func @transform_1(%arg0: i32, %arg1: i32) -> (i32, i32, i32) {
    %c0_i32 = arith.constant 0 : i32
    %c0_i32_0 = arith.constant 0 : i32
    %c0_i32_1 = arith.constant 0 : i32
    return %arg0, %c0_i32, %c0_i32_0 : i32, i32, i32
  }
  func.func @transform_2(%arg0: i32, %arg1: i32) -> (i32, i32, i32) {
    %c0_i32 = arith.constant 0 : i32
    %c0_i32_0 = arith.constant 0 : i32
    %c0_i32_1 = arith.constant 0 : i32
    return %arg0, %c0_i32, %c0_i32_0 : i32, i32, i32
  }
  func.func @transform_3(%arg0: i32, %arg1: i32) -> (i32, i32, i32) {
    %c0_i32 = arith.constant 0 : i32
    %c0_i32_0 = arith.constant 0 : i32
    %c0_i32_1 = arith.constant 0 : i32
    return %arg0, %c0_i32, %c0_i32_0 : i32, i32, i32
  }
  func.func @transform_4(%arg0: i32, %arg1: i32) -> (i32, i32, i32) {
    %c0_i32 = arith.constant 0 : i32
    %c0_i32_0 = arith.constant 0 : i32
    %c0_i32_1 = arith.constant 0 : i32
    return %arg0, %c0_i32, %c0_i32_0 : i32, i32, i32
  }
  func.func @transform_5(%arg0: i32, %arg1: i32) -> (i32, i32, i32) {
    %c0_i32 = arith.constant 0 : i32
    %c0_i32_0 = arith.constant 0 : i32
    return %arg0, %c0_i32, %arg1 : i32, i32, i32
  }
}

</mosaic_0001>

<llo_original>
// kernel: multimodal_rnp_forward.1
$region0: #{multimodal_rnp_forward.1}
  #allocation0 [shape = 'u32[]', space=smem, size = 0x4, offset = 0x4, fixed_abs, tag = 'smem constant byte address 0x4 - core index']
  #allocation1 [shape = 'u32[72,128]{1,0:T(1,128)}', space=vmem, size = 0x9000, scoped, tag = 'internal scratch']
  %s0 = inlined_call_operand.vmem [shape: bf16[3,2,128], index: 0, kind: input, shape index: {}]
  %s1 = inlined_call_operand.vmem [shape: bf16[3,128,2], index: 1, kind: input, shape index: {}]
  %s2 = inlined_call_operand.hbm [shape: bf16[3,256,128], index: 2, kind: input, shape index: {}]
  %s3 = inlined_call_operand.vmem [shape: bf16[3,4,256], index: 3, kind: input, shape index: {}]
  %s4 = inlined_call_operand.hbm [shape: f32[3,388,128], index: 4, kind: input, shape index: {}]
  %s5 = inlined_call_operand.vmem [shape: f32[3,6,128], index: 5, kind: output, shape index: {}]
  %s6 = sld [smem:[#allocation0]]
  $region61: #{multimodal_rnp_forward.1} parent=0
    _
  %s8 = ssub.s32 1, %s6
  %s9 = scalar_select 0, %s8, %s6
  $region1: #{multimodal_rnp_forward.1} parent=0
    #allocation2 [shape = 'u8[131072]{0}', space=vmem, size = 0x20000, scoped, tag = 'input window, operand 2']
    #allocation3 [shape = 's32[2]{0}', space=sflag, size = 0x8, scoped, tag = 'scoped memory for multimodal_rnp_forward.1']
    #allocation4 [shape = 'u8[401408]{0}', space=vmem, size = 0x62000, scoped, tag = 'input window, operand 4']
    #allocation5 [shape = 's32[2]{0}', space=sflag, size = 0x8, scoped, tag = 'scoped memory for multimodal_rnp_forward.1']
    %10 = vsyncpa [#allocation3], 0
    %s11 = scalar_lea.sflag [#allocation3], 1
    %12 = vsyncpa %s11, 0
    %13 = vsyncpa [#allocation5], 0
    %s14 = scalar_lea.sflag [#allocation5], 1
    %15 = vsyncpa %s14, 0
    loop: start=0, step=1, limit=5
    $region2: #{multimodal_rnp_forward.1} parent=1 // loop_pre_header
      _
    $region3: #{multimodal_rnp_forward.1} parent=1 // loop_header
      %s17 = sphi 0, %s21
      %p18 = scmp.ge.s32.totalorder %s17, 5
      %s24 = sphi 0, %s36
      %s25 = sphi 0, %s32
      %s26 = sphi 0, %s24
      %s27 = sphi 0, %s25
      %s28 = sphi 0, %s26
      %s29 = sphi 0, %s27
      %s41 = sphi 0, %s43
      %s44 = sphi 0, %s41
      %s45 = sphi 0, %s44
      %s61 = sphi 0, %s45
      %s67 = sphi 0, %s69
      %s70 = sphi 0, %s67
      %s71 = sphi 0, %s70
      %s87 = sphi 0, %s71
      %s93 = sphi 0, %s95
      %s96 = sphi 0, %s93
      %s97 = sphi 0, %s96
      %s113 = sphi 0, %s97
      %s119 = sphi 0, %s121
      %s122 = sphi 0, %s119
      %s123 = sphi 0, %s122
      %s139 = sphi 0, %s123
      %s145 = sphi 0, %s147
      %s148 = sphi 0, %s145
      %s149 = sphi 0, %s148
      %s165 = sphi 0, %s149
      %s173 = sphi 0, %s175
      %s176 = sphi 0, %s173
      %s177 = sphi 0, %s176
      %s193 = sphi 0, %s177
    $region4: #{multimodal_rnp_forward.1} parent=1 // loop_header_branch
      %20 = sbr.rel (%p18) target = $region8
    $region5: #{multimodal_rnp_forward.1} parent=1 // loop_body
      %s22 = ssub.s32 %s17, 1
      %s23 = ssub.s32 %s17, 2
      %s30 = sadd.s32 1, %s25
      %p31 = scmp.ge.s32.totalorder %s30, 1
      %s32 = scalar_select %p31, 0, %s30
      %s33 = sadd.s32 1, %s24
      %s34 = scalar_select %p31, %s33, %s24
      %p35 = scmp.ge.s32.totalorder %s34, 3
      %s36 = scalar_select %p35, 0, %s34
      %s37 = ssub.s32 %s24, %s36
      %s38 = ssub.s32 %s25, %s32
      %s39 = sor.u32 %s37, %s38
      %p40 = scmp.eq.s32.totalorder %s39, 0
      %s42 = sadd.s32 %s41, 1
      %s43 = scalar_select %p40, %s41, %s42
      %p46 = pneg %p40
      %p47 = scmp.eq.s32.totalorder %s17, 2
      %p48 = por %p46, %p47
      %p49 = scmp.ne.s32.totalorder %s41, %s44
      %p50 = scmp.eq.s32.totalorder %s17, 0
      %p51 = por %p49, %p50
      %p52 = scmp.ne.s32.totalorder %s41, %s44
      %p53 = scmp.eq.s32.totalorder %s22, 2
      %p54 = por %p52, %p53
      %p55 = scmp.ne.s32.totalorder %s44, %s45
      %p56 = scmp.eq.s32.totalorder %s22, 0
      %p57 = por %p55, %p56
      %p58 = scmp.ne.s32.totalorder %s44, %s45
      %p59 = scmp.eq.s32.totalorder %s23, 2
      %p60 = por %p58, %p59
      %p62 = scmp.ne.s32.totalorder %s45, %s61
      %p63 = scmp.eq.s32.totalorder %s23, 0
      %p64 = por %p62, %p63
      %s65 = ssub.s32 %s24, %s36
      %p66 = scmp.eq.s32.totalorder %s65, 0
      %s68 = sadd.s32 %s67, 1
      %s69 = scalar_select %p66, %s67, %s68
      %p72 = pneg %p66
      %p73 = scmp.eq.s32.totalorder %s17, 2
      %p74 = por %p72, %p73
      %p75 = scmp.ne.s32.totalorder %s67, %s70
      %p76 = scmp.eq.s32.totalorder %s17, 0
      %p77 = por %p75, %p76
      %p78 = scmp.ne.s32.totalorder %s67, %s70
      %p79 = scmp.eq.s32.totalorder %s22, 2
      %p80 = por %p78, %p79
      %p81 = scmp.ne.s32.totalorder %s70, %s71
      %p82 = scmp.eq.s32.totalorder %s22, 0
      %p83 = por %p81, %p82
      %p84 = scmp.ne.s32.totalorder %s70, %s71
      %p85 = scmp.eq.s32.totalorder %s23, 2
      %p86 = por %p84, %p85
      %p88 = scmp.ne.s32.totalorder %s71, %s87
      %p89 = scmp.eq.s32.totalorder %s23, 0
      %p90 = por %p88, %p89
      %s91 = ssub.s32 %s24, %s36
      %p92 = scmp.eq.s32.totalorder %s91, 0
      %s94 = sadd.s32 %s93, 1
      %s95 = scalar_select %p92, %s93, %s94
      %p98 = pneg %p92
      %p99 = scmp.eq.s32.totalorder %s17, 2
      %p100 = por %p98, %p99
      %p101 = scmp.ne.s32.totalorder %s93, %s96
      %p102 = scmp.eq.s32.totalorder %s17, 0
      %p103 = por %p101, %p102
      %p104 = scmp.ne.s32.totalorder %s93, %s96
      %p105 = scmp.eq.s32.totalorder %s22, 2
      %p106 = por %p104, %p105
      %p107 = scmp.ne.s32.totalorder %s96, %s97
      %p108 = scmp.eq.s32.totalorder %s22, 0
      %p109 = por %p107, %p108
      %p110 = scmp.ne.s32.totalorder %s96, %s97
      %p111 = scmp.eq.s32.totalorder %s23, 2
      %p112 = por %p110, %p111
      %p114 = scmp.ne.s32.totalorder %s97, %s113
      %p115 = scmp.eq.s32.totalorder %s23, 0
      %p116 = por %p114, %p115
      %s117 = ssub.s32 %s24, %s36
      %p118 = scmp.eq.s32.totalorder %s117, 0
      %s120 = sadd.s32 %s119, 1
      %s121 = scalar_select %p118, %s119, %s120
      %p124 = pneg %p118
      %p125 = scmp.eq.s32.totalorder %s17, 2
      %p126 = por %p124, %p125
      %p127 = scmp.ne.s32.totalorder %s119, %s122
      %p128 = scmp.eq.s32.totalorder %s17, 0
      %p129 = por %p127, %p128
      %p130 = scmp.ne.s32.totalorder %s119, %s122
      %p131 = scmp.eq.s32.totalorder %s22, 2
      %p132 = por %p130, %p131
      %p133 = scmp.ne.s32.totalorder %s122, %s123
      %p134 = scmp.eq.s32.totalorder %s22, 0
      %p135 = por %p133, %p134
      %p136 = scmp.ne.s32.totalorder %s122, %s123
      %p137 = scmp.eq.s32.totalorder %s23, 2
      %p138 = por %p136, %p137
      %p140 = scmp.ne.s32.totalorder %s123, %s139
      %p141 = scmp.eq.s32.totalorder %s23, 0
      %p142 = por %p140, %p141
      %s143 = ssub.s32 %s24, %s36
      %p144 = scmp.eq.s32.totalorder %s143, 0
      %s146 = sadd.s32 %s145, 1
      %s147 = scalar_select %p144, %s145, %s146
      %p150 = pneg %p144
      %p151 = scmp.eq.s32.totalorder %s17, 2
      %p152 = por %p150, %p151
      %p153 = scmp.ne.s32.totalorder %s145, %s148
      %p154 = scmp.eq.s32.totalorder %s17, 0
      %p155 = por %p153, %p154
      %p156 = scmp.ne.s32.totalorder %s145, %s148
      %p157 = scmp.eq.s32.totalorder %s22, 2
      %p158 = por %p156, %p157
      %p159 = scmp.ne.s32.totalorder %s148, %s149
      %p160 = scmp.eq.s32.totalorder %s22, 0
      %p161 = por %p159, %p160
      %p162 = scmp.ne.s32.totalorder %s148, %s149
      %p163 = scmp.eq.s32.totalorder %s23, 2
      %p164 = por %p162, %p163
      %p166 = scmp.ne.s32.totalorder %s149, %s165
      %p167 = scmp.eq.s32.totalorder %s23, 0
      %p168 = por %p166, %p167
      %s169 = ssub.s32 %s24, %s36
      %s170 = ssub.s32 %s25, %s32
      %s171 = sor.u32 %s169, %s170
      %p172 = scmp.eq.s32.totalorder %s171, 0
      %s174 = sadd.s32 %s173, 1
      %s175 = scalar_select %p172, %s173, %s174
      %p178 = pneg %p172
      %p179 = scmp.eq.s32.totalorder %s17, 2
      %p180 = por %p178, %p179
      %p181 = scmp.ne.s32.totalorder %s173, %s176
      %p182 = scmp.eq.s32.totalorder %s17, 0
      %p183 = por %p181, %p182
      %p184 = scmp.ne.s32.totalorder %s173, %s176
      %p185 = scmp.eq.s32.totalorder %s22, 2
      %p186 = por %p184, %p185
      %p187 = scmp.ne.s32.totalorder %s176, %s177
      %p188 = scmp.eq.s32.totalorder %s22, 0
      %p189 = por %p187, %p188
      %p190 = scmp.ne.s32.totalorder %s176, %s177
      %p191 = scmp.eq.s32.totalorder %s23, 2
      %p192 = por %p190, %p191
      %p194 = scmp.ne.s32.totalorder %s177, %s193
      %p195 = scmp.eq.s32.totalorder %s23, 0
      %p196 = por %p194, %p195
      %p197 = scmp.le.s32.totalorder 1, %s17
      %p198 = scmp.lt.s32.totalorder %s17, 4
      %p199 = pnand %p197, %p198
      %p200 = pneg %p199
      // Predicated region
      $region9: #{multimodal_rnp_forward.1} parent=5 // pred_check
        _
      $region10: #{multimodal_rnp_forward.1} parent=5 // pred_check_branch
        %202 = sbr.rel (%p199) target = $region12
      $region11: #{multimodal_rnp_forward.1} parent=5 // pred_region
        %s203 = ssub.s32 %s17, 1
      $region12: #{multimodal_rnp_forward.1} parent=5 // pred_fallthru
        _
      %p204 = scmp.lt.s32.totalorder %s17, 3
      // Predicated region
      $region13: #{multimodal_rnp_forward.1} parent=5 // pred_check
        %p205 = pneg %p204
      $region14: #{multimodal_rnp_forward.1} parent=5 // pred_check_branch
        %207 = sbr.rel (%p205) target = $region16
      $region15: #{multimodal_rnp_forward.1} parent=5 // pred_region
        // Predicated region
        $region17: #{multimodal_rnp_forward.1} parent=15 // pred_check
          %p208 = pneg %p51
        $region18: #{multimodal_rnp_forward.1} parent=15 // pred_check_branch
          %210 = sbr.rel (%p208) target = $region20
        $region19: #{multimodal_rnp_forward.1} parent=15 // pred_region
          %p211 = scmp.lt.s32.totalorder %s24, 2
          %s212 = scalar_select %p211, %s24, 2
          %p213 = scmp.lt.s32.totalorder %s25, 0
          %s214 = scalar_select %p213, %s25, 0
          %s215 = sadd.s32 %s214, %s212
          %s216 = scalar_lea.vmem %s0, %s215
        $region20: #{multimodal_rnp_forward.1} parent=15 // pred_fallthru
          _
        // Predicated region
        $region21: #{multimodal_rnp_forward.1} parent=15 // pred_check
          %p217 = pneg %p77
        $region22: #{multimodal_rnp_forward.1} parent=15 // pred_check_branch
          %219 = sbr.rel (%p217) target = $region24
        $region23: #{multimodal_rnp_forward.1} parent=15 // pred_region
          %p220 = scmp.lt.s32.totalorder %s24, 2
          %s221 = scalar_select %p220, %s24, 2
          %s222 = smul.addr %s221, 16
          %s223 = smul.addr %s222, 4
          %s224 = scalar_lea.vmem %s1, %s223
        $region24: #{multimodal_rnp_forward.1} parent=15 // pred_fallthru
          _
        // Predicated region
        $region25: #{multimodal_rnp_forward.1} parent=15 // pred_check
          %p225 = pneg %p103
        $region26: #{multimodal_rnp_forward.1} parent=15 // pred_check_branch
          %227 = sbr.rel (%p225) target = $region28
        $region27: #{multimodal_rnp_forward.1} parent=15 // pred_region
          %s228 = sand.u32 %s93, 1
          %s229 = scalar_lea.sflag [#allocation3], %s228
          %s230 = sand.u32 %s93, 1
          %s231 = smul.addr %s230, 128
          %s232 = scalar_lea.vmem [#allocation2], %s231
          %234 = vsyncadd %s229, 0
          %s235 = smul.addr %s24, 32
          %s236 = smul.addr %s235, 4
          %s237 = scalar_lea.hbm %s2, %s236
          %s238 = sshll.u32 %s237, 4
          %s239 = int_to_ptr.hbm [resolvable:$true] %s238
          %s240 = sshll.u32 %s232, 4
          %s241 = int_to_ptr.vmem [resolvable:$true] %s240
          %246 = dma.hbm_to_vmem [thread:$0]  %s239, 2048, %s241, %s229, 64, 64, 4
        $region28: #{multimodal_rnp_forward.1} parent=15 // pred_fallthru
          _
        // Predicated region
        $region29: #{multimodal_rnp_forward.1} parent=15 // pred_check
          %p247 = pneg %p129
        $region30: #{multimodal_rnp_forward.1} parent=15 // pred_check_branch
          %249 = sbr.rel (%p247) target = $region32
        $region31: #{multimodal_rnp_forward.1} parent=15 // pred_region
          %p250 = scmp.lt.s32.totalorder %s24, 2
          %s251 = scalar_select %p250, %s24, 2
          %s252 = smul.addr %s251, 2
          %s253 = smul.addr %s252, 2
          %s254 = scalar_lea.vmem %s3, %s253
        $region32: #{multimodal_rnp_forward.1} parent=15 // pred_fallthru
          _
        // Predicated region
        $region33: #{multimodal_rnp_forward.1} parent=15 // pred_check
          %p255 = pneg %p155
        $region34: #{multimodal_rnp_forward.1} parent=15 // pred_check_branch
          %257 = sbr.rel (%p255) target = $region36
        $region35: #{multimodal_rnp_forward.1} parent=15 // pred_region
          %s258 = sand.u32 %s145, 1
          %s259 = scalar_lea.sflag [#allocation5], %s258
          %s260 = sand.u32 %s145, 1
          %s261 = smul.addr %s260, 392
          %s262 = scalar_lea.vmem [#allocation4], %s261
          %264 = vsyncadd %s259, 0
          %s265 = smul.addr %s24, 49
          %s266 = smul.addr %s265, 8
          %s267 = scalar_lea.hbm %s4, %s266
          %s268 = sshll.u32 %s267, 4
          %s269 = int_to_ptr.hbm [resolvable:$true] %s268
          %s270 = sshll.u32 %s262, 4
          %s271 = int_to_ptr.vmem [resolvable:$true] %s270
          %276 = dma.hbm_to_vmem [thread:$0]  %s269, 6272, %s271, %s259, 128, 128, 8
        $region36: #{multimodal_rnp_forward.1} parent=15 // pred_fallthru
          _
      $region16: #{multimodal_rnp_forward.1} parent=5 // pred_fallthru
        _
      %p277 = scmp.le.s32.totalorder 1, %s17
      %p278 = scmp.lt.s32.totalorder %s17, 4
      %p279 = pnand %p277, %p278
      %p280 = pneg %p279
      // Predicated region
      $region37: #{multimodal_rnp_forward.1} parent=5 // pred_check
        _
      $region38: #{multimodal_rnp_forward.1} parent=5 // pred_check_branch
        %282 = sbr.rel (%p279) target = $region40
      $region39: #{multimodal_rnp_forward.1} parent=5 // pred_region
        %s283 = ssub.s32 %s17, 1
        %s284 = sand.u32 %s96, 1
        %s285 = scalar_lea.sflag [#allocation3], %s284
        %s286 = sand.u32 %s96, 1
        %s287 = smul.addr %s286, 128
        %s288 = scalar_lea.vmem [#allocation2], %s287
        // Predicated region
        $region41: #{multimodal_rnp_forward.1} parent=39 // pred_check
          %p289 = pneg %p109
        $region42: #{multimodal_rnp_forward.1} parent=39 // pred_check_branch
          %291 = sbr.rel (%p289) target = $region44
        $region43: #{multimodal_rnp_forward.1} parent=39 // pred_region
          %293 = dma.done %s285, 2048
        $region44: #{multimodal_rnp_forward.1} parent=39 // pred_fallthru
          _
        %s294 = sand.u32 %s148, 1
        %s295 = scalar_lea.sflag [#allocation5], %s294
        %s296 = sand.u32 %s148, 1
        %s297 = smul.addr %s296, 392
        %s298 = scalar_lea.vmem [#allocation4], %s297
        // Predicated region
        $region45: #{multimodal_rnp_forward.1} parent=39 // pred_check
          %p299 = pneg %p161
        $region46: #{multimodal_rnp_forward.1} parent=39 // pred_check_branch
          %301 = sbr.rel (%p299) target = $region48
        $region47: #{multimodal_rnp_forward.1} parent=39 // pred_region
          %303 = dma.done %s295, 6272
        $region48: #{multimodal_rnp_forward.1} parent=39 // pred_fallthru
          _
        %p304 = scmp.lt.s32.totalorder %s26, 2
        %s305 = scalar_select %p304, %s26, 2
        %p306 = scmp.lt.s32.totalorder %s27, 0
        %s307 = scalar_select %p306, %s27, 0
        %s308 = sadd.s32 %s307, %s305
        %s309 = scalar_lea.vmem %s0, %s308
        %p310 = pneg %p57
        %p311 = pneg %p54
        %p312 = scmp.lt.s32.totalorder %s26, 2
        %s313 = scalar_select %p312, %s26, 2
        %s314 = smul.addr %s313, 16
        %s315 = smul.addr %s314, 4
        %s316 = scalar_lea.vmem %s1, %s315
        %p317 = pneg %p83
        %p318 = pneg %p80
        %s319 = sand.u32 %s96, 1
        %s320 = scalar_lea.sflag [#allocation3], %s319
        %s321 = sand.u32 %s96, 1
        %s322 = smul.addr %s321, 128
        %s323 = scalar_lea.vmem [#allocation2], %s322
        %p324 = pneg %p109
        %p325 = pneg %p106
        %p326 = scmp.lt.s32.totalorder %s26, 2
        %s327 = scalar_select %p326, %s26, 2
        %s328 = smul.addr %s327, 2
        %s329 = smul.addr %s328, 2
        %s330 = scalar_lea.vmem %s3, %s329
        %p331 = pneg %p135
        %p332 = pneg %p132
        %s333 = sand.u32 %s148, 1
        %s334 = scalar_lea.sflag [#allocation5], %s333
        %s335 = sand.u32 %s148, 1
        %s336 = smul.addr %s335, 392
        %s337 = scalar_lea.vmem [#allocation4], %s336
        %p338 = pneg %p161
        %p339 = pneg %p158
        %p340 = pneg %p189
        %p341 = pneg %p186
        %p342 = scmp.lt.s32.totalorder %s26, 2
        %s343 = scalar_select %p342, %s26, 2
        %p344 = scmp.lt.s32.totalorder %s27, 0
        %s345 = scalar_select %p344, %s27, 0
        %s346 = sadd.s32 %s345, %s343
        %s347 = smul.addr %s346, 8
        %s348 = scalar_lea.vmem %s5, %s347
        %p349 = scmp.lt.s32.totalorder %s26, 2
        %s350 = scalar_select %p349, %s26, 2
        %p351 = scmp.lt.s32.totalorder %s27, 0
        %s352 = scalar_select %p351, %s27, 0
        %s353 = sadd.s32 %s352, %s350
        %s354 = scalar_lea.vmem %s0, %s353
        %p355 = scmp.lt.s32.totalorder %s26, 2
        %s356 = scalar_select %p355, %s26, 2
        %s357 = smul.addr %s356, 16
        %s358 = smul.addr %s357, 4
        %s359 = scalar_lea.vmem %s1, %s358
        %p360 = scmp.lt.s32.totalorder %s26, 2
        %s361 = scalar_select %p360, %s26, 2
        %s362 = smul.addr %s361, 2
        %s363 = smul.addr %s362, 2
        %s364 = scalar_lea.vmem %s3, %s363
        %p365 = scmp.lt.s32.totalorder %s26, 2
        %s366 = scalar_select %p365, %s26, 2
        %p367 = scmp.lt.s32.totalorder %s27, 0
        %s368 = scalar_select %p367, %s27, 0
        %s369 = sadd.s32 %s368, %s366
        %s370 = smul.addr %s369, 8
        %s371 = scalar_lea.vmem %s5, %s370
        %v373 = vld [vmem:[%s354] sm:$0x1]
        %v374 = vld [vmem:[%s359] sm:$0xf]
        %v375 = vld [vmem:[%s359 + $0x4] sm:$0xf]
        %v376 = vld [vmem:[%s359 + $0x8] sm:$0xf]
        %v377 = vld [vmem:[%s359 + $0xc] sm:$0xf]
        %v378 = vld [vmem:[%s359 + $0x10] sm:$0xf]
        %v379 = vld [vmem:[%s359 + $0x14] sm:$0xf]
        %v380 = vld [vmem:[%s359 + $0x18] sm:$0xf]
        %v381 = vld [vmem:[%s359 + $0x1c] sm:$0xf]
        %v382 = vld [vmem:[%s359 + $0x20] sm:$0xf]
        %v383 = vld [vmem:[%s359 + $0x24] sm:$0xf]
        %v384 = vld [vmem:[%s359 + $0x28] sm:$0xf]
        %v385 = vld [vmem:[%s359 + $0x2c] sm:$0xf]
        %v386 = vld [vmem:[%s359 + $0x30] sm:$0xf]
        %v387 = vld [vmem:[%s359 + $0x34] sm:$0xf]
        %v388 = vld [vmem:[%s359 + $0x38] sm:$0xf]
        %v389 = vld [vmem:[%s359 + $0x3c] sm:$0xf]
        %v390 = vld [vmem:[%s298] sm:$0xff]
        %v391 = vld [vmem:[%s298 + $0x8] sm:$0xff]
        %v392 = vld [vmem:[%s298 + $0x10] sm:$0xff]
        %v393 = vld [vmem:[%s298 + $0x18] sm:$0xff]
        %v394 = vld [vmem:[%s298 + $0x20] sm:$0xff]
        %v395 = vld [vmem:[%s298 + $0x28] sm:$0xff]
        %v396 = vld [vmem:[%s298 + $0x30] sm:$0xff]
        %v397 = vld [vmem:[%s298 + $0x38] sm:$0xff]
        %v398 = vld [vmem:[%s298 + $0x40] sm:$0xff]
        %v399 = vld [vmem:[%s298 + $0x48] sm:$0xff]
        %v400 = vld [vmem:[%s298 + $0x50] sm:$0xff]
        %v401 = vld [vmem:[%s298 + $0x58] sm:$0xff]
        %v402 = vld [vmem:[%s298 + $0x60] sm:$0xff]
        %v403 = vld [vmem:[%s298 + $0x68] sm:$0xff]
        %v404 = vld [vmem:[%s298 + $0x70] sm:$0xff]
        %v405 = vld [vmem:[%s298 + $0x78] sm:$0xff]
        %v422 = vunpack.c.l.b16 %v374
        %v423 = vunpack.c.l.b16 %v375
        %v424 = vunpack.c.l.b16 %v376
        %v425 = vunpack.c.l.b16 %v377
        %v426 = vunpack.c.l.b16 %v378
        %v427 = vunpack.c.l.b16 %v379
        %v428 = vunpack.c.l.b16 %v380
        %v429 = vunpack.c.l.b16 %v381
        %v430 = vunpack.c.l.b16 %v382
        %v431 = vunpack.c.l.b16 %v383
        %v432 = vunpack.c.l.b16 %v384
        %v433 = vunpack.c.l.b16 %v385
        %v434 = vunpack.c.l.b16 %v386
        %v435 = vunpack.c.l.b16 %v387
        %v436 = vunpack.c.l.b16 %v388
        %v437 = vunpack.c.l.b16 %v389
        %v438 = vpack.c.b16 %v423, %v422
        %v439 = vpack.c.b16 %v425, %v424
        %v440 = vpack.c.b16 %v427, %v426
        %v441 = vpack.c.b16 %v429, %v428
        %v442 = vpack.c.b16 %v431, %v430
        %v443 = vpack.c.b16 %v433, %v432
        %v444 = vpack.c.b16 %v435, %v434
        %v445 = vpack.c.b16 %v437, %v436
        %vm446 = vcmask 15360
        %v448 = vsel %vm446, %v438, 0
        %v451 = vsel %vm446, %v439, 0
        %v454 = vsel %vm446, %v440, 0
        %v457 = vsel %vm446, %v441, 0
        %v460 = vsel %vm446, %v442, 0
        %v463 = vsel %vm446, %v443, 0
        %v466 = vsel %vm446, %v444, 0
        %v469 = vsel %vm446, %v445, 0
        %vm471 = vcmask 1040384
        %v473 = vsel %vm471, %v373, 0
        %475 = vmatpush.bf16.msra.mxu0 0
        %476 = vmatpush.bf16.msra.mxu0 0
        %477 = vmatpush.bf16.msra.mxu0 0
        %478 = vmatpush.bf16.msra.mxu0 0
        %479 = vmatpush.bf16.msra.mxu0 0
        %480 = vmatpush.bf16.msra.mxu0 0
        %481 = vmatpush.bf16.msra.mxu0 0
        %482 = vmatpush.bf16.msra.mxu0 %v473
        %483 = vmatmul.bf16.gmra.mxu0 %v448
        %v484 = vpop.f32.mrf.mxu0
        %v485 = vadd.f32 %v390, %v484
        %v486 = vpop.f32.mrf.mxu0
        %v487 = vadd.f32 %v391, %v486
        %488 = vmatmul.bf16.gmra.mxu0 %v451
        %v489 = vpop.f32.mrf.mxu0
        %v490 = vadd.f32 %v392, %v489
        %v491 = vpop.f32.mrf.mxu0
        %v492 = vadd.f32 %v393, %v491
        %493 = vmatmul.bf16.gmra.mxu0 %v454
        %v494 = vpop.f32.mrf.mxu0
        %v495 = vadd.f32 %v394, %v494
        %v496 = vpop.f32.mrf.mxu0
        %v497 = vadd.f32 %v395, %v496
        %498 = vmatmul.bf16.gmra.mxu0 %v457
        %v499 = vpop.f32.mrf.mxu0
        %v500 = vadd.f32 %v396, %v499
        %v501 = vpop.f32.mrf.mxu0
        %v502 = vadd.f32 %v397, %v501
        %503 = vmatmul.bf16.gmra.mxu0 %v460
        %v504 = vpop.f32.mrf.mxu0
        %v505 = vadd.f32 %v398, %v504
        %v506 = vpop.f32.mrf.mxu0
        %v507 = vadd.f32 %v399, %v506
        %508 = vmatmul.bf16.gmra.mxu0 %v463
        %v509 = vpop.f32.mrf.mxu0
        %v510 = vadd.f32 %v400, %v509
        %v511 = vpop.f32.mrf.mxu0
        %v512 = vadd.f32 %v401, %v511
        %513 = vmatmul.bf16.gmra.mxu0 %v466
        %v514 = vpop.f32.mrf.mxu0
        %v515 = vadd.f32 %v402, %v514
        %v516 = vpop.f32.mrf.mxu0
        %v517 = vadd.f32 %v403, %v516
        %518 = vmatmul.bf16.gmra.mxu0 %v469
        %v519 = vpop.f32.mrf.mxu0
        %v520 = vadd.f32 %v404, %v519
        %v521 = vpop.f32.mrf.mxu0
        %v522 = vadd.f32 %v405, %v521
        %523 = vdwg.mxu0
        %vm524 = vcmp.gt.f32.partialorder %v485, 0.0
        %vm525 = vcmp.gt.f32.partialorder %v487, 0.0
        %vm526 = vcmp.gt.f32.partialorder %v490, 0.0
        %vm527 = vcmp.gt.f32.partialorder %v492, 0.0
        %vm528 = vcmp.gt.f32.partialorder %v495, 0.0
        %vm529 = vcmp.gt.f32.partialorder %v497, 0.0
        %vm530 = vcmp.gt.f32.partialorder %v500, 0.0
        %vm531 = vcmp.gt.f32.partialorder %v502, 0.0
        %vm532 = vcmp.gt.f32.partialorder %v505, 0.0
        %vm533 = vcmp.gt.f32.partialorder %v507, 0.0
        %vm534 = vcmp.gt.f32.partialorder %v510, 0.0
        %vm535 = vcmp.gt.f32.partialorder %v512, 0.0
        %vm536 = vcmp.gt.f32.partialorder %v515, 0.0
        %vm537 = vcmp.gt.f32.partialorder %v517, 0.0
        %vm538 = vcmp.gt.f32.partialorder %v520, 0.0
        %vm539 = vcmp.gt.f32.partialorder %v522, 0.0
        %v540 = vmul.f32 %v485, 0.25
        %v541 = vmul.f32 %v487, 0.25
        %v542 = vmul.f32 %v490, 0.25
        %v543 = vmul.f32 %v492, 0.25
        %v544 = vmul.f32 %v495, 0.25
        %v545 = vmul.f32 %v497, 0.25
        %v546 = vmul.f32 %v500, 0.25
        %v547 = vmul.f32 %v502, 0.25
        %v548 = vmul.f32 %v505, 0.25
        %v549 = vmul.f32 %v507, 0.25
        %v550 = vmul.f32 %v510, 0.25
        %v551 = vmul.f32 %v512, 0.25
        %v552 = vmul.f32 %v515, 0.25
        %v553 = vmul.f32 %v517, 0.25
        %v554 = vmul.f32 %v520, 0.25
        %v555 = vmul.f32 %v522, 0.25
        %v556 = vsel %vm524, %v485, %v540
        %v557 = vsel %vm525, %v487, %v541
        %v558 = vsel %vm526, %v490, %v542
        %v559 = vsel %vm527, %v492, %v543
        %v560 = vsel %vm528, %v495, %v544
        %v561 = vsel %vm529, %v497, %v545
        %v562 = vsel %vm530, %v500, %v546
        %v563 = vsel %vm531, %v502, %v547
        %v564 = vsel %vm532, %v505, %v548
        %v565 = vsel %vm533, %v507, %v549
        %v566 = vsel %vm534, %v510, %v550
        %v567 = vsel %vm535, %v512, %v551
        %v568 = vsel %vm536, %v515, %v552
        %v569 = vsel %vm537, %v517, %v553
        %v570 = vsel %vm538, %v520, %v554
        %v571 = vsel %vm539, %v522, %v555
        %v572 = vld [vmem:[%s288] sm:$0xf]
        %v573 = vld [vmem:[%s288 + $0x4] sm:$0xf]
        %v574 = vld [vmem:[%s288 + $0x8] sm:$0xf]
        %v575 = vld [vmem:[%s288 + $0xc] sm:$0xf]
        %v576 = vld [vmem:[%s288 + $0x10] sm:$0xf]
        %v577 = vld [vmem:[%s288 + $0x14] sm:$0xf]
        %v578 = vld [vmem:[%s288 + $0x18] sm:$0xf]
        %v579 = vld [vmem:[%s288 + $0x1c] sm:$0xf]
        %v580 = vld [vmem:[%s288 + $0x20] sm:$0xf]
        %v581 = vld [vmem:[%s288 + $0x24] sm:$0xf]
        %v582 = vld [vmem:[%s288 + $0x28] sm:$0xf]
        %v583 = vld [vmem:[%s288 + $0x2c] sm:$0xf]
        %v584 = vld [vmem:[%s288 + $0x30] sm:$0xf]
        %v585 = vld [vmem:[%s288 + $0x34] sm:$0xf]
        %v586 = vld [vmem:[%s288 + $0x38] sm:$0xf]
        %v587 = vld [vmem:[%s288 + $0x3c] sm:$0xf]
        %v588 = vld [vmem:[%s288 + $0x40] sm:$0xf]
        %v589 = vld [vmem:[%s288 + $0x44] sm:$0xf]
        %v590 = vld [vmem:[%s288 + $0x48] sm:$0xf]
        %v591 = vld [vmem:[%s288 + $0x4c] sm:$0xf]
        %v592 = vld [vmem:[%s288 + $0x50] sm:$0xf]
        %v593 = vld [vmem:[%s288 + $0x54] sm:$0xf]
        %v594 = vld [vmem:[%s288 + $0x58] sm:$0xf]
        %v595 = vld [vmem:[%s288 + $0x5c] sm:$0xf]
        %v596 = vld [vmem:[%s288 + $0x60] sm:$0xf]
        %v597 = vld [vmem:[%s288 + $0x64] sm:$0xf]
        %v598 = vld [vmem:[%s288 + $0x68] sm:$0xf]
        %v599 = vld [vmem:[%s288 + $0x6c] sm:$0xf]
        %v600 = vld [vmem:[%s288 + $0x70] sm:$0xf]
        %v601 = vld [vmem:[%s288 + $0x74] sm:$0xf]
        %v602 = vld [vmem:[%s288 + $0x78] sm:$0xf]
        %v603 = vld [vmem:[%s288 + $0x7c] sm:$0xf]
        %v604 = vpack.c.bf16 %v557, %v556
        %v605 = vpack.c.bf16 %v559, %v558
        %v606 = vpack.c.bf16 %v561, %v560
        %v607 = vpack.c.bf16 %v563, %v562
        %v608 = vpack.c.bf16 %v565, %v564
        %v609 = vpack.c.bf16 %v567, %v566
        %v610 = vpack.c.bf16 %v569, %v568
        %v611 = vpack.c.bf16 %v571, %v570
        %v612 = vld [vmem:[%s298 + $0x80] sm:$0xff]
        %v613 = vld [vmem:[%s298 + $0x88] sm:$0xff]
        %v614 = vld [vmem:[%s298 + $0x90] sm:$0xff]
        %v615 = vld [vmem:[%s298 + $0x98] sm:$0xff]
        %v616 = vld [vmem:[%s298 + $0xa0] sm:$0xff]
        %v617 = vld [vmem:[%s298 + $0xa8] sm:$0xff]
        %v618 = vld [vmem:[%s298 + $0xb0] sm:$0xff]
        %v619 = vld [vmem:[%s298 + $0xb8] sm:$0xff]
        %v620 = vld [vmem:[%s298 + $0xc0] sm:$0xff]
        %v621 = vld [vmem:[%s298 + $0xc8] sm:$0xff]
        %v622 = vld [vmem:[%s298 + $0xd0] sm:$0xff]
        %v623 = vld [vmem:[%s298 + $0xd8] sm:$0xff]
        %v624 = vld [vmem:[%s298 + $0xe0] sm:$0xff]
        %v625 = vld [vmem:[%s298 + $0xe8] sm:$0xff]
        %v626 = vld [vmem:[%s298 + $0xf0] sm:$0xff]
        %v627 = vld [vmem:[%s298 + $0xf8] sm:$0xff]
        %v628 = vld [vmem:[%s298 + $0x100] sm:$0xff]
        %v629 = vld [vmem:[%s298 + $0x108] sm:$0xff]
        %v630 = vld [vmem:[%s298 + $0x110] sm:$0xff]
        %v631 = vld [vmem:[%s298 + $0x118] sm:$0xff]
        %v632 = vld [vmem:[%s298 + $0x120] sm:$0xff]
        %v633 = vld [vmem:[%s298 + $0x128] sm:$0xff]
        %v634 = vld [vmem:[%s298 + $0x130] sm:$0xff]
        %v635 = vld [vmem:[%s298 + $0x138] sm:$0xff]
        %v636 = vld [vmem:[%s298 + $0x140] sm:$0xff]
        %v637 = vld [vmem:[%s298 + $0x148] sm:$0xff]
        %v638 = vld [vmem:[%s298 + $0x150] sm:$0xff]
        %v639 = vld [vmem:[%s298 + $0x158] sm:$0xff]
        %v640 = vld [vmem:[%s298 + $0x160] sm:$0xff]
        %v641 = vld [vmem:[%s298 + $0x168] sm:$0xff]
        %v642 = vld [vmem:[%s298 + $0x170] sm:$0xff]
        %v643 = vld [vmem:[%s298 + $0x178] sm:$0xff]
        %v676 = vunpack.c.l.b16 %v572
        %v677 = vunpack.c.l.b16 %v573
        %v678 = vunpack.c.l.b16 %v574
        %v679 = vunpack.c.l.b16 %v575
        %v680 = vunpack.c.l.b16 %v576
        %v681 = vunpack.c.l.b16 %v577
        %v682 = vunpack.c.l.b16 %v578
        %v683 = vunpack.c.l.b16 %v579
        %v684 = vunpack.c.l.b16 %v580
        %v685 = vunpack.c.l.b16 %v581
        %v686 = vunpack.c.l.b16 %v582
        %v687 = vunpack.c.l.b16 %v583
        %v688 = vunpack.c.l.b16 %v584
        %v689 = vunpack.c.l.b16 %v585
        %v690 = vunpack.c.l.b16 %v586
        %v691 = vunpack.c.l.b16 %v587
        %v692 = vunpack.c.l.b16 %v588
        %v693 = vunpack.c.l.b16 %v589
        %v694 = vunpack.c.l.b16 %v590
        %v695 = vunpack.c.l.b16 %v591
        %v696 = vunpack.c.l.b16 %v592
        %v697 = vunpack.c.l.b16 %v593
        %v698 = vunpack.c.l.b16 %v594
        %v699 = vunpack.c.l.b16 %v595
        %v700 = vunpack.c.l.b16 %v596
        %v701 = vunpack.c.l.b16 %v597
        %v702 = vunpack.c.l.b16 %v598
        %v703 = vunpack.c.l.b16 %v599
        %v704 = vunpack.c.l.b16 %v600
        %v705 = vunpack.c.l.b16 %v601
        %v706 = vunpack.c.l.b16 %v602
        %v707 = vunpack.c.l.b16 %v603
        %v708 = vpack.c.b16 %v677, %v676
        %v709 = vpack.c.b16 %v679, %v678
        %v710 = vpack.c.b16 %v681, %v680
        %v711 = vpack.c.b16 %v683, %v682
        %v712 = vpack.c.b16 %v685, %v684
        %v713 = vpack.c.b16 %v687, %v686
        %v714 = vpack.c.b16 %v689, %v688
        %v715 = vpack.c.b16 %v691, %v690
        %v716 = vpack.c.b16 %v693, %v692
        %v717 = vpack.c.b16 %v695, %v694
        %v718 = vpack.c.b16 %v697, %v696
        %v719 = vpack.c.b16 %v699, %v698
        %v720 = vpack.c.b16 %v701, %v700
        %v721 = vpack.c.b16 %v703, %v702
        %v722 = vpack.c.b16 %v705, %v704
        %v723 = vpack.c.b16 %v707, %v706
        %740 = vmatpush.bf16.msra.mxu0 %v611
        %741 = vmatpush.bf16.msra.mxu0 %v610
        %742 = vmatpush.bf16.msra.mxu0 %v609
        %743 = vmatpush.bf16.msra.mxu0 %v608
        %744 = vmatpush.bf16.msra.mxu0 %v607
        %745 = vmatpush.bf16.msra.mxu0 %v606
        %746 = vmatpush.bf16.msra.mxu0 %v605
        %747 = vmatpush.bf16.msra.mxu0 %v604
        %748 = vmatmul.bf16.gmra.mxu0 %v708
        %v749 = vpop.f32.mrf.mxu0
        %v750 = vadd.f32 %v612, %v749
        %v751 = vpop.f32.mrf.mxu0
        %v752 = vadd.f32 %v613, %v751
        %753 = vmatmul.bf16.gmra.mxu0 %v709
        %v754 = vpop.f32.mrf.mxu0
        %v755 = vadd.f32 %v614, %v754
        %v756 = vpop.f32.mrf.mxu0
        %v757 = vadd.f32 %v615, %v756
        %758 = vmatmul.bf16.gmra.mxu0 %v710
        %v759 = vpop.f32.mrf.mxu0
        %v760 = vadd.f32 %v616, %v759
        %v761 = vpop.f32.mrf.mxu0
        %v762 = vadd.f32 %v617, %v761
        %763 = vmatmul.bf16.gmra.mxu0 %v711
        %v764 = vpop.f32.mrf.mxu0
        %v765 = vadd.f32 %v618, %v764
        %v766 = vpop.f32.mrf.mxu0
        %v767 = vadd.f32 %v619, %v766
        %768 = vmatmul.bf16.gmra.mxu0 %v712
        %v769 = vpop.f32.mrf.mxu0
        %v770 = vadd.f32 %v620, %v769
        %v771 = vpop.f32.mrf.mxu0
        %v772 = vadd.f32 %v621, %v771
        %773 = vmatmul.bf16.gmra.mxu0 %v713
        %v774 = vpop.f32.mrf.mxu0
        %v775 = vadd.f32 %v622, %v774
        %v776 = vpop.f32.mrf.mxu0
        %v777 = vadd.f32 %v623, %v776
        %778 = vmatmul.bf16.gmra.mxu0 %v714
        %v779 = vpop.f32.mrf.mxu0
        %v780 = vadd.f32 %v624, %v779
        %v781 = vpop.f32.mrf.mxu0
        %v782 = vadd.f32 %v625, %v781
        %783 = vmatmul.bf16.gmra.mxu0 %v715
        %v784 = vpop.f32.mrf.mxu0
        %v785 = vadd.f32 %v626, %v784
        %v786 = vpop.f32.mrf.mxu0
        %v787 = vadd.f32 %v627, %v786
        %788 = vmatmul.bf16.gmra.mxu0 %v716
        %v789 = vpop.f32.mrf.mxu0
        %v790 = vadd.f32 %v628, %v789
        %v791 = vpop.f32.mrf.mxu0
        %v792 = vadd.f32 %v629, %v791
        %793 = vmatmul.bf16.gmra.mxu0 %v717
        %v794 = vpop.f32.mrf.mxu0
        %v795 = vadd.f32 %v630, %v794
        %v796 = vpop.f32.mrf.mxu0
        %v797 = vadd.f32 %v631, %v796
        %798 = vmatmul.bf16.gmra.mxu0 %v718
        %v799 = vpop.f32.mrf.mxu0
        %v800 = vadd.f32 %v632, %v799
        %v801 = vpop.f32.mrf.mxu0
        %v802 = vadd.f32 %v633, %v801
        %803 = vmatmul.bf16.gmra.mxu0 %v719
        %v804 = vpop.f32.mrf.mxu0
        %v805 = vadd.f32 %v634, %v804
        %v806 = vpop.f32.mrf.mxu0
        %v807 = vadd.f32 %v635, %v806
        %808 = vmatmul.bf16.gmra.mxu0 %v720
        %v809 = vpop.f32.mrf.mxu0
        %v810 = vadd.f32 %v636, %v809
        %v811 = vpop.f32.mrf.mxu0
        %v812 = vadd.f32 %v637, %v811
        %813 = vmatmul.bf16.gmra.mxu0 %v721
        %v814 = vpop.f32.mrf.mxu0
        %v815 = vadd.f32 %v638, %v814
        %v816 = vpop.f32.mrf.mxu0
        %v817 = vadd.f32 %v639, %v816
        %818 = vmatmul.bf16.gmra.mxu0 %v722
        %v819 = vpop.f32.mrf.mxu0
        %v820 = vadd.f32 %v640, %v819
        %v821 = vpop.f32.mrf.mxu0
        %v822 = vadd.f32 %v641, %v821
        %823 = vmatmul.bf16.gmra.mxu0 %v723
        %v824 = vpop.f32.mrf.mxu0
        %v825 = vadd.f32 %v642, %v824
        %v826 = vpop.f32.mrf.mxu0
        %v827 = vadd.f32 %v643, %v826
        %828 = vdwg.mxu0
        %vm829 = vcmp.gt.f32.partialorder %v750, 0.0
        %vm830 = vcmp.gt.f32.partialorder %v752, 0.0
        %vm831 = vcmp.gt.f32.partialorder %v755, 0.0
        %vm832 = vcmp.gt.f32.partialorder %v757, 0.0
        %vm833 = vcmp.gt.f32.partialorder %v760, 0.0
        %vm834 = vcmp.gt.f32.partialorder %v762, 0.0
        %vm835 = vcmp.gt.f32.partialorder %v765, 0.0
        %vm836 = vcmp.gt.f32.partialorder %v767, 0.0
        %vm837 = vcmp.gt.f32.partialorder %v770, 0.0
        %vm838 = vcmp.gt.f32.partialorder %v772, 0.0
        %vm839 = vcmp.gt.f32.partialorder %v775, 0.0
        %vm840 = vcmp.gt.f32.partialorder %v777, 0.0
        %vm841 = vcmp.gt.f32.partialorder %v780, 0.0
        %vm842 = vcmp.gt.f32.partialorder %v782, 0.0
        %vm843 = vcmp.gt.f32.partialorder %v785, 0.0
        %vm844 = vcmp.gt.f32.partialorder %v787, 0.0
        %vm845 = vcmp.gt.f32.partialorder %v790, 0.0
        %vm846 = vcmp.gt.f32.partialorder %v792, 0.0
        %vm847 = vcmp.gt.f32.partialorder %v795, 0.0
        %vm848 = vcmp.gt.f32.partialorder %v797, 0.0
        %vm849 = vcmp.gt.f32.partialorder %v800, 0.0
        %vm850 = vcmp.gt.f32.partialorder %v802, 0.0
        %vm851 = vcmp.gt.f32.partialorder %v805, 0.0
        %vm852 = vcmp.gt.f32.partialorder %v807, 0.0
        %vm853 = vcmp.gt.f32.partialorder %v810, 0.0
        %vm854 = vcmp.gt.f32.partialorder %v812, 0.0
        %vm855 = vcmp.gt.f32.partialorder %v815, 0.0
        %vm856 = vcmp.gt.f32.partialorder %v817, 0.0
        %vm857 = vcmp.gt.f32.partialorder %v820, 0.0
        %vm858 = vcmp.gt.f32.partialorder %v822, 0.0
        %vm859 = vcmp.gt.f32.partialorder %v825, 0.0
        %vm860 = vcmp.gt.f32.partialorder %v827, 0.0
        %v861 = vmul.f32 %v750, 0.25
        %v862 = vmul.f32 %v752, 0.25
        %v863 = vmul.f32 %v755, 0.25
        %v864 = vmul.f32 %v757, 0.25
        %v865 = vmul.f32 %v760, 0.25
        %v866 = vmul.f32 %v762, 0.25
        %v867 = vmul.f32 %v765, 0.25
        %v868 = vmul.f32 %v767, 0.25
        %v869 = vmul.f32 %v770, 0.25
        %v870 = vmul.f32 %v772, 0.25
        %v871 = vmul.f32 %v775, 0.25
        %v872 = vmul.f32 %v777, 0.25
        %v873 = vmul.f32 %v780, 0.25
        %v874 = vmul.f32 %v782, 0.25
        %v875 = vmul.f32 %v785, 0.25
        %v876 = vmul.f32 %v787, 0.25
        %v877 = vmul.f32 %v790, 0.25
        %v878 = vmul.f32 %v792, 0.25
        %v879 = vmul.f32 %v795, 0.25
        %v880 = vmul.f32 %v797, 0.25
        %v881 = vmul.f32 %v800, 0.25
        %v882 = vmul.f32 %v802, 0.25
        %v883 = vmul.f32 %v805, 0.25
        %v884 = vmul.f32 %v807, 0.25
        %v885 = vmul.f32 %v810, 0.25
        %v886 = vmul.f32 %v812, 0.25
        %v887 = vmul.f32 %v815, 0.25
        %v888 = vmul.f32 %v817, 0.25
        %v889 = vmul.f32 %v820, 0.25
        %v890 = vmul.f32 %v822, 0.25
        %v891 = vmul.f32 %v825, 0.25
        %v892 = vmul.f32 %v827, 0.25
        %v893 = vsel %vm829, %v750, %v861
        %v894 = vsel %vm830, %v752, %v862
        %v895 = vsel %vm831, %v755, %v863
        %v896 = vsel %vm832, %v757, %v864
        %v897 = vsel %vm833, %v760, %v865
        %v898 = vsel %vm834, %v762, %v866
        %v899 = vsel %vm835, %v765, %v867
        %v900 = vsel %vm836, %v767, %v868
        %v901 = vsel %vm837, %v770, %v869
        %v902 = vsel %vm838, %v772, %v870
        %v903 = vsel %vm839, %v775, %v871
        %v904 = vsel %vm840, %v777, %v872
        %v905 = vsel %vm841, %v780, %v873
        %v906 = vsel %vm842, %v782, %v874
        %v907 = vsel %vm843, %v785, %v875
        %v908 = vsel %vm844, %v787, %v876
        %v909 = vsel %vm845, %v790, %v877
        %v910 = vsel %vm846, %v792, %v878
        %v911 = vsel %vm847, %v795, %v879
        %v912 = vsel %vm848, %v797, %v880
        %v913 = vsel %vm849, %v800, %v881
        %v914 = vsel %vm850, %v802, %v882
        %v915 = vsel %vm851, %v805, %v883
        %v916 = vsel %vm852, %v807, %v884
        %v917 = vsel %vm853, %v810, %v885
        %v918 = vsel %vm854, %v812, %v886
        %v919 = vsel %vm855, %v815, %v887
        %v920 = vsel %vm856, %v817, %v888
        %v921 = vsel %vm857, %v820, %v889
        %v922 = vsel %vm858, %v822, %v890
        %v923 = vsel %vm859, %v825, %v891
        %v924 = vsel %vm860, %v827, %v892
        %v925 = vld [vmem:[%s364] sm:$0xf]
        %v926 = vpack.c.bf16 %v894, %v893
        %v927 = vpack.c.bf16 %v896, %v895
        %v928 = vpack.c.bf16 %v898, %v897
        %v929 = vpack.c.bf16 %v900, %v899
        %v930 = vpack.c.bf16 %v902, %v901
        %v931 = vpack.c.bf16 %v904, %v903
        %v932 = vpack.c.bf16 %v906, %v905
        %v933 = vpack.c.bf16 %v908, %v907
        %v934 = vpack.c.bf16 %v910, %v909
        %v935 = vpack.c.bf16 %v912, %v911
        %v936 = vpack.c.bf16 %v914, %v913
        %v937 = vpack.c.bf16 %v916, %v915
        %v938 = vpack.c.bf16 %v918, %v917
        %v939 = vpack.c.bf16 %v920, %v919
        %v940 = vpack.c.bf16 %v922, %v921
        %v941 = vpack.c.bf16 %v924, %v923
        %v942 = vld [vmem:[%s298 + $0x180] sm:$0xf]
        %944 = vst [vmem:[#allocation1] ss:$4 sm:$0xff] %v925
        %v945 = vld.sshfl [vmem:[#allocation1] sm:$0xff pattern:$0x73625140]
        %v946 = vld.sshfl [vmem:[#allocation1 + $0x8] sm:$0xff pattern:$0x73625140]
        %949 = vmatpush.bf16.msra.mxu0 %v933
        %950 = vmatpush.bf16.msra.mxu0 %v932
        %951 = vmatpush.bf16.msra.mxu0 %v931
        %952 = vmatpush.bf16.msra.mxu0 %v930
        %953 = vmatpush.bf16.msra.mxu0 %v929
        %954 = vmatpush.bf16.msra.mxu0 %v928
        %955 = vmatpush.bf16.msra.mxu0 %v927
        %956 = vmatpush.bf16.msra.mxu0 %v926
        %957 = vmatmul.bf16.gmra.mxu0 %v945
        %v958 = vpop.f32.mrf.mxu0
        %v959 = vadd.f32 %v942, %v958
        %v960 = vpop.f32.mrf.mxu0
        %961 = vdwg.mxu0
        %962 = vmatpush.bf16.msra.mxu0 %v941
        %963 = vmatpush.bf16.msra.mxu0 %v940
        %964 = vmatpush.bf16.msra.mxu0 %v939
        %965 = vmatpush.bf16.msra.mxu0 %v938
        %966 = vmatpush.bf16.msra.mxu0 %v937
        %967 = vmatpush.bf16.msra.mxu0 %v936
        %968 = vmatpush.bf16.msra.mxu0 %v935
        %969 = vmatpush.bf16.msra.mxu0 %v934
        %970 = vmatmul.bf16.gmra.mxu0 %v946
        %v971 = vpop.f32.mrf.mxu0
        %v972 = vadd.f32 %v959, %v971
        %v973 = vpop.f32.mrf.mxu0
        %974 = vdwg.mxu0
        %v976 = vrot.slane %v972, 6
        %v978 = vsub.f32 %v972, %v976
        %v979 = vmul.f32 %v978, %v978
        %v980 = vmul.f32 %v979, 0.5
        %v982 = vrot.slane %v980, 2
        %vm984 = vcmask 1041408
        %v985 = vsel %vm984, %v982, %v976
        %986 = vst [vmem:[%s371] sm:$0x3f] %v985
        %p987 = scmp.lt.s32.totalorder %s26, 2
        %s988 = scalar_select %p987, %s26, 2
        %p989 = scmp.lt.s32.totalorder %s27, 0
        %s990 = scalar_select %p989, %s27, 0
        %s991 = sadd.s32 %s990, %s988
        %s992 = smul.addr %s991, 8
        %s993 = scalar_lea.vmem %s5, %s992
        // Predicated region
        $region49: #{multimodal_rnp_forward.1} parent=39 // pred_check
          %p994 = pneg %p186
        $region50: #{multimodal_rnp_forward.1} parent=39 // pred_check_branch
          %996 = sbr.rel (%p994) target = $region52
        $region51: #{multimodal_rnp_forward.1} parent=39 // pred_region
          _
        $region52: #{multimodal_rnp_forward.1} parent=39 // pred_fallthru
          _
      $region40: #{multimodal_rnp_forward.1} parent=5 // pred_fallthru
        _
      %p997 = scmp.le.s32.totalorder 2, %s17
      // Predicated region
      $region53: #{multimodal_rnp_forward.1} parent=5 // pred_check
        %p998 = pneg %p997
      $region54: #{multimodal_rnp_forward.1} parent=5 // pred_check_branch
        %1000 = sbr.rel (%p998) target = $region56
      $region55: #{multimodal_rnp_forward.1} parent=5 // pred_region
        %s1001 = ssub.s32 %s17, 2
        // Predicated region
        $region57: #{multimodal_rnp_forward.1} parent=55 // pred_check
          %p1002 = pneg %p192
        $region58: #{multimodal_rnp_forward.1} parent=55 // pred_check_branch
          %1004 = sbr.rel (%p1002) target = $region60
        $region59: #{multimodal_rnp_forward.1} parent=55 // pred_region
          %p1005 = scmp.lt.s32.totalorder %s28, 2
          %s1006 = scalar_select %p1005, %s28, 2
          %p1007 = scmp.lt.s32.totalorder %s29, 0
          %s1008 = scalar_select %p1007, %s29, 0
          %s1009 = sadd.s32 %s1008, %s1006
          %s1010 = smul.addr %s1009, 8
          %s1011 = scalar_lea.vmem %s5, %s1010
        $region60: #{multimodal_rnp_forward.1} parent=55 // pred_fallthru
          _
      $region56: #{multimodal_rnp_forward.1} parent=5 // pred_fallthru
        _
    $region6: #{multimodal_rnp_forward.1} parent=1 // loop_footer
      %s21 = sadd.s32 1, %s17
    $region7: #{multimodal_rnp_forward.1} parent=1 // loop_footer_branch
      %16 = sbr.rel target = $region3
    $region8: #{multimodal_rnp_forward.1} parent=1 // loop_exit
      _
    %1012 = vsyncpa [#allocation3], 1
    %s1013 = scalar_lea.sflag [#allocation3], 1
    %1014 = vsyncpa %s1013, 1
    %1015 = vsyncpa [#allocation5], 1
    %s1016 = scalar_lea.sflag [#allocation5], 1
    %1017 = vsyncpa %s1016, 1

</llo_original>
